<compile_context>
chip_gen: v6e
topology: v6e:2x2x1
jax: 0.10.0
libtpu: 0.0.40
codegen_flags: <defaults>
</compile_context>

<pallas_src>
import functools

import jax
import jax.numpy as jnp
from jax.experimental import pallas as pl
from jax.experimental.pallas import tpu as pltpu


def _round_up(x, m):
    return (x + m - 1) // m * m


def _make_supcon_kernel(*, temperature, base_temperature, n_valid, tm, tn,
                        use_codes):
    """Build the tiled SupCon kernel (codes path or dense-mask fallback)."""
    inv_temp = 1.0 / float(temperature)
    scale = -(float(temperature) / float(base_temperature))
    neg_big = -1e30

    def kernel(*refs):
        if use_codes:
            (a_ref, ct_ref, alab_ref, clab_ref, o_ref,
             m_s, l_s, s1_s, p_s) = refs
        else:
            (a_ref, ct_ref, mask_ref, o_ref,
             m_s, l_s, s1_s, p_s) = refs

        i = pl.program_id(0)          # anchor-row tile  (parallel)
        j = pl.program_id(1)          # contrast-col tile (reduction, inner)
        nj = pl.num_programs(1)

        # ---- init per-row accumulators at the start of each row stripe ----
        @pl.when(j == 0)
        def _():
            m_s[...] = jnp.full_like(m_s, neg_big)
            l_s[...] = jnp.zeros_like(l_s)
            s1_s[...] = jnp.zeros_like(s1_s)
            p_s[...] = jnp.zeros_like(p_s)

        # ---- logits tile: anchor @ contrast^T / temperature (MXU, f32 acc) --
        a = a_ref[...]                                  # (TM, D) native dtype
        ct = ct_ref[...]                                # (D, TN) native dtype
        if a.dtype == jnp.float32:
            # fold 1/temp into the small (TM x D) tile (exact in f32)
            s = jnp.dot(a * inv_temp, ct, preferred_element_type=jnp.float32)
        else:
            # keep bf16 feeding the MXU; scale the f32 result
            s = jnp.dot(a, ct, preferred_element_type=jnp.float32) * inv_temp

        # ---- per-tile masks rebuilt from indices / codes (no MxN DMA) ------
        row_g = i * tm + jax.lax.broadcasted_iota(jnp.int32, (tm, tn), 0)
        col_g = j * tn + jax.lax.broadcasted_iota(jnp.int32, (tm, tn), 1)
        valid_col = col_g < n_valid                     # drop padded columns
        exp_mask = jnp.logical_and(valid_col, row_g != col_g)  # no self-contrast

        if use_codes:
            pos = alab_ref[...] == clab_ref[...]        # (TM,1)==(1,TN) -> (TM,TN)
        else:
            pos = mask_ref[...] != 0                    # dense int8 fallback
        pos = jnp.logical_and(pos, exp_mask).astype(jnp.float32)

        # ---- online log-sum-exp + positive accumulators --------------------
        m_prev = m_s[...]
        m_new = jnp.maximum(
            m_prev,
            jnp.max(jnp.where(valid_col, s, neg_big), axis=1, keepdims=True))
        alpha = jnp.exp(m_prev - m_new)
        p_exp = jnp.where(exp_mask, jnp.exp(s - m_new), 0.0)
        l_s[...] = alpha * l_s[...] + jnp.sum(p_exp, axis=1, keepdims=True)
        m_s[...] = m_new
        s1_s[...] = s1_s[...] + jnp.sum(pos * s, axis=1, keepdims=True)
        p_s[...] = p_s[...] + jnp.sum(pos, axis=1, keepdims=True)

        # ---- finalize this row stripe on the last contrast tile ------------
        @pl.when(j == nj - 1)
        def _():
            lse = m_s[...] + jnp.log(l_s[...])
            # mean_log_prob_pos = sum(pos*z)/sum(pos) - logsumexp(z over non-self)
            mean_log_prob_pos = (s1_s[...] * pl.reciprocal(p_s[...], approx=False)
                                 - lse)
            o_ref[...] = scale * mean_log_prob_pos      # (TM, 1) per-row loss

    return kernel


def supcon_loss(features, labels=None, mask=None, *,
                temperature=0.07, contrast_mode='all', base_temperature=0.07,
                block_m=256, block_n=512):
    """JAX/Pallas port of SupConLoss.forward (forward-only)."""
    if features.ndim < 3:
        raise ValueError('`features` needs to be [bsz, n_views, ...]')
    if features.ndim > 3:
        features = features.reshape(features.shape[0], features.shape[1], -1)
    bsz, n_views, dim = features.shape

    if labels is not None and mask is not None:
        raise ValueError('Cannot define both `labels` and `mask`')

    # torch.cat(torch.unbind(features, dim=1), dim=0) == transpose then flatten
    contrast_feature = jnp.swapaxes(features, 0, 1).reshape(n_views * bsz, dim)
    if contrast_mode == 'one':
        anchor_feature, anchor_count = features[:, 0], 1
    elif contrast_mode == 'all':
        anchor_feature, anchor_count = contrast_feature, n_views
    else:
        raise ValueError('Unknown mode: {}'.format(contrast_mode))

    M = anchor_count * bsz            # anchor rows
    N = n_views * bsz                 # contrast cols
    D = dim
    feat_dtype = features.dtype       # keep native dtype (bf16 stays bf16)

    # ---- positive-mask representation --------------------------------------
    use_codes = mask is None
    if use_codes:
        if labels is None:
            base_codes = jnp.arange(bsz, dtype=jnp.int32)        # SimCLR / eye
        else:
            labels = jnp.reshape(labels, (-1,))
            if labels.shape[0] != bsz:
                raise ValueError('Num of labels does not match num of features')
            base_codes = labels.astype(jnp.int32)
        a_codes = jnp.tile(base_codes, (anchor_count,))           # (M,)
        c_codes = jnp.tile(base_codes, (n_views,))                # (N,)
    else:
        tiled_mask = jnp.tile(mask != 0, (anchor_count, n_views)).astype(jnp.int8)

    # ---- tile sizes + padding ----------------------------------------------
    if feat_dtype == jnp.float32:
        feat_align = 8
    elif feat_dtype in (jnp.bfloat16, jnp.float16):
        feat_align = 16
    else:
        feat_align = 32
    row_align = max(feat_align, 8 if use_codes else 32)   # int8 mask tile = (32,128)

    TM = block_m if M >= block_m else _round_up(M, row_align)
    TN = block_n if N >= block_n else _round_up(N, 128)
    M_pad = _round_up(M, TM)
    N_pad = _round_up(N, TN)
    D_pad = _round_up(D, 128)

    anchor_p = jnp.zeros((M_pad, D_pad), feat_dtype).at[:M, :D].set(
        anchor_feature.astype(feat_dtype))
    # pre-transposed contrast slab: (D, N) so the kernel matmul is NN
    contrast_t = jnp.zeros((D_pad, N_pad), feat_dtype).at[:D, :N].set(
        contrast_feature.astype(feat_dtype).T)

    if use_codes:
        a_codes_p = jnp.full((M_pad, 1), -1, jnp.int32).at[:M, 0].set(a_codes)
        c_codes_p = jnp.full((1, N_pad), -2, jnp.int32).at[0, :N].set(c_codes)
        extra_inputs = (a_codes_p, c_codes_p)
        extra_specs = [pl.BlockSpec((TM, 1), lambda i, j: (i, 0)),
                       pl.BlockSpec((1, TN), lambda i, j: (0, j))]
    else:
        mask_p = jnp.zeros((M_pad, N_pad), jnp.int8).at[:M, :N].set(tiled_mask)
        extra_inputs = (mask_p,)
        extra_specs = [pl.BlockSpec((TM, TN), lambda i, j: (i, j))]

    kernel = _make_supcon_kernel(temperature=temperature,
                                 base_temperature=base_temperature,
                                 n_valid=N, tm=TM, tn=TN, use_codes=use_codes)

    grid = (M_pad // TM, N_pad // TN)   # N (reduction) axis is innermost
    row_loss = pl.pallas_call(
        kernel,
        out_shape=jax.ShapeDtypeStruct((M_pad, 1), jnp.float32),
        grid_spec=pltpu.PrefetchScalarGridSpec(
            num_scalar_prefetch=0,
            grid=grid,
            in_specs=[pl.BlockSpec((TM, D_pad), lambda i, j: (i, 0)),
                      pl.BlockSpec((D_pad, TN), lambda i, j: (0, j))]
                     + extra_specs,
            out_specs=pl.BlockSpec((TM, 1), lambda i, j: (i, 0)),
            scratch_shapes=[pltpu.VMEM((TM, 1), jnp.float32)] * 4),
        compiler_params=pltpu.CompilerParams(
            dimension_semantics=("parallel", "arbitrary"),
            vmem_limit_bytes=40 * 1024 * 1024),
    )(anchor_p, contrast_t, *extra_inputs)

    # loss.view(anchor_count, batch_size).mean() == mean over all M anchors
    return jnp.sum(row_loss[:M, 0]) / M


def _supcon_loss_ref(features, labels=None, mask=None, *,
                     temperature=0.07, contrast_mode='all',
                     base_temperature=0.07):
    """Pure-jnp reference mirroring the PyTorch forward, for verification."""
    bsz, n_views, dim = features.shape
    if labels is None and mask is None:
        base_mask = jnp.eye(bsz, dtype=jnp.float32)
    elif labels is not None:
        labels = jnp.reshape(labels, (-1, 1))
        base_mask = (labels == labels.T).astype(jnp.float32)
    else:
        base_mask = mask.astype(jnp.float32)
    contrast_feature = jnp.swapaxes(features, 0, 1).reshape(n_views * bsz, dim)
    if contrast_mode == 'one':
        anchor_feature, anchor_count = features[:, 0], 1
    else:
        anchor_feature, anchor_count = contrast_feature, n_views
    logits = (anchor_feature @ contrast_feature.T) / temperature
    logits = logits - jnp.max(logits, axis=1, keepdims=True)
    m = jnp.tile(base_mask, (anchor_count, n_views))
    M, N = m.shape
    logits_mask = 1.0 - jnp.eye(M, N, dtype=jnp.float32)
    m = m * logits_mask
    exp_logits = jnp.exp(logits) * logits_mask
    log_prob = logits - jnp.log(jnp.sum(exp_logits, axis=1, keepdims=True))
    mean_log_prob_pos = jnp.sum(m * log_prob, axis=1) / jnp.sum(m, axis=1)
    loss = -(temperature / base_temperature) * mean_log_prob_pos
    return jnp.mean(loss)


if __name__ == "__main__":
    key = jax.random.PRNGKey(0)
    bsz, n_views, dim = 8, 2, 32
    features = jax.random.normal(key, (bsz, n_views, dim), dtype=jnp.float32)
    # L2-normalize per view, as typical for SupCon inputs
    features = features / jnp.linalg.norm(features, axis=-1, keepdims=True)
    labels = jnp.array([0, 1, 2, 3, 0, 1, 2, 3], dtype=jnp.int32)

    # supervised (labels) path — in-kernel code-compare mask
    out = jax.block_until_ready(supcon_loss(features, labels=labels))
    ref = _supcon_loss_ref(features, labels=labels)
    assert jnp.allclose(out, ref, rtol=1e-4, atol=1e-4), (out, ref)

    # unsupervised SimCLR path (mask == eye)
    out_u = jax.block_until_ready(supcon_loss(features))
    ref_u = _supcon_loss_ref(features)
    assert jnp.allclose(out_u, ref_u, rtol=1e-4, atol=1e-4), (out_u, ref_u)

    # explicit-mask path — dense int8 tiled-mask fallback kernel
    expl_mask = (labels[:, None] == labels[None, :]).astype(jnp.float32)
    out_m = jax.block_until_ready(supcon_loss(features, mask=expl_mask))
    ref_m = _supcon_loss_ref(features, mask=expl_mask)
    assert jnp.allclose(out_m, ref_m, rtol=1e-4, atol=1e-4), (out_m, ref_m)

    # contrast_mode='one'
    out_o = jax.block_until_ready(
        supcon_loss(features, labels=labels, contrast_mode='one'))
    ref_o = _supcon_loss_ref(features, labels=labels, contrast_mode='one')
    assert jnp.allclose(out_o, ref_o, rtol=1e-4, atol=1e-4), (out_o, ref_o)

    print("KERNEL_OK")
</pallas_src>

<mosaic_0001>
module attributes {stable_mosaic.version = 11 : i64} {
  func.func @kernel(%arg0: i32, %arg1: i32, %arg2: memref<16x128xf32, #tpu.memory_space<vmem>>, %arg3: memref<128x128xf32, #tpu.memory_space<vmem>>, %arg4: memref<16x1xi32, #tpu.memory_space<vmem>>, %arg5: memref<1x128xi32, #tpu.memory_space<vmem>>, %arg6: memref<16x1xf32, #tpu.memory_space<vmem>>, %arg7: memref<16x1xf32, #tpu.memory_space<vmem>>, %arg8: memref<16x1xf32, #tpu.memory_space<vmem>>, %arg9: memref<16x1xf32, #tpu.memory_space<vmem>>, %arg10: memref<16x1xf32, #tpu.memory_space<vmem>>) attributes {dimension_semantics = [#tpu.dimension_semantics<parallel>, #tpu.dimension_semantics<arbitrary>], iteration_bounds = array<i64: 1, 1>, scalar_prefetch = 0 : i64, scratch_operands = 4 : i64, tpu.core_type = #tpu.core_type<tc>, window_params = [{transform_indices = @transform_0, window_bounds = array<i64: 16, 128>}, {transform_indices = @transform_1, window_bounds = array<i64: 128, 128>}, {transform_indices = @transform_2, window_bounds = array<i64: 16, 1>}, {transform_indices = @transform_3, window_bounds = array<i64: 1, 128>}, {transform_indices = @transform_4, window_bounds = array<i64: 16, 1>}]} {
    %c0_i32 = arith.constant 0 : i32
    %0 = arith.cmpi eq, %arg1, %c0_i32 : i32
    %1 = arith.extui %0 : i1 to i32
    %c0_i32_0 = arith.constant 0 : i32
    %2 = arith.cmpi ne, %1, %c0_i32_0 : i32
    scf.if %2 {
      %cst_34 = arith.constant -1.000000e+30 : f32
      %62 = vector.broadcast %cst_34 : f32 to vector<16x1xf32>
      %c0_35 = arith.constant 0 : index
      %c0_36 = arith.constant 0 : index
      %63 = vector.load %arg7[%c0_35, %c0_36] : memref<16x1xf32, #tpu.memory_space<vmem>>, vector<16x1xf32>
      tpu.vector_store %arg7[%c0_35, %c0_36], %62 {strides = array<i32>} : memref<16x1xf32, #tpu.memory_space<vmem>>, vector<16x1xf32>,
      %cst_37 = arith.constant 0.000000e+00 : f32
      %64 = vector.broadcast %cst_37 : f32 to vector<16x1xf32>
      %c0_38 = arith.constant 0 : index
      %c0_39 = arith.constant 0 : index
      %65 = vector.load %arg8[%c0_38, %c0_39] : memref<16x1xf32, #tpu.memory_space<vmem>>, vector<16x1xf32>
      tpu.vector_store %arg8[%c0_38, %c0_39], %64 {strides = array<i32>} : memref<16x1xf32, #tpu.memory_space<vmem>>, vector<16x1xf32>,
      %cst_40 = arith.constant 0.000000e+00 : f32
      %66 = vector.broadcast %cst_40 : f32 to vector<16x1xf32>
      %c0_41 = arith.constant 0 : index
      %c0_42 = arith.constant 0 : index
      %67 = vector.load %arg9[%c0_41, %c0_42] : memref<16x1xf32, #tpu.memory_space<vmem>>, vector<16x1xf32>
      tpu.vector_store %arg9[%c0_41, %c0_42], %66 {strides = array<i32>} : memref<16x1xf32, #tpu.memory_space<vmem>>, vector<16x1xf32>,
      %cst_43 = arith.constant 0.000000e+00 : f32
      %68 = vector.broadcast %cst_43 : f32 to vector<16x1xf32>
      %c0_44 = arith.constant 0 : index
      %c0_45 = arith.constant 0 : index
      %69 = vector.load %arg10[%c0_44, %c0_45] : memref<16x1xf32, #tpu.memory_space<vmem>>, vector<16x1xf32>
      tpu.vector_store %arg10[%c0_44, %c0_45], %68 {strides = array<i32>} : memref<16x1xf32, #tpu.memory_space<vmem>>, vector<16x1xf32>,
    } else {
    }
    %c0 = arith.constant 0 : index
    %c0_1 = arith.constant 0 : index
    %3 = vector.load %arg2[%c0, %c0_1] : memref<16x128xf32, #tpu.memory_space<vmem>>, vector<16x128xf32>
    %c0_2 = arith.constant 0 : index
    %c0_3 = arith.constant 0 : index
    %4 = vector.load %arg3[%c0_2, %c0_3] : memref<128x128xf32, #tpu.memory_space<vmem>>, vector<128x128xf32>
    %cst = arith.constant 14.2857141 : f32
    %5 = vector.broadcast %cst : f32 to vector<16x128xf32>
    %6 = arith.mulf %3, %5 : vector<16x128xf32>
    %cst_4 = arith.constant dense<0.000000e+00> : vector<16x128xf32>
    %7 = tpu.matmul %6, %4, %cst_4 {dimension_numbers = #tpu.dot_dimension_numbers<[1], [0], [0], [1], [0, 0, 1, 1], [], []>} : vector<16x128xf32>, vector<128x128xf32>, vector<16x128xf32> -> vector<16x128xf32>
    %c16_i32 = arith.constant 16 : i32
    %8 = arith.muli %arg0, %c16_i32 : i32
    %9 = tpu.iota {dimensions = array<i32: 0>} : vector<16x128xi32>
    %10 = vector.broadcast %8 : i32 to vector<16x128xi32>
    %11 = arith.addi %10, %9 : vector<16x128xi32>
    %c128_i32 = arith.constant 128 : i32
    %12 = arith.muli %arg1, %c128_i32 : i32
    %13 = tpu.iota {dimensions = array<i32: 1>} : vector<16x128xi32>
    %14 = vector.broadcast %12 : i32 to vector<16x128xi32>
    %15 = arith.addi %14, %13 : vector<16x128xi32>
    %c16_i32_5 = arith.constant 16 : i32
    %16 = vector.broadcast %c16_i32_5 : i32 to vector<16x128xi32>
    %17 = arith.cmpi slt, %15, %16 : vector<16x128xi32>
    %18 = arith.cmpi ne, %11, %15 : vector<16x128xi32>
    %19 = arith.andi %17, %18 : vector<16x128xi1>
    %c0_6 = arith.constant 0 : index
    %c0_7 = arith.constant 0 : index
    %20 = vector.load %arg4[%c0_6, %c0_7] : memref<16x1xi32, #tpu.memory_space<vmem>>, vector<16x1xi32>
    %c0_8 = arith.constant 0 : index
    %c0_9 = arith.constant 0 : index
    %21 = vector.load %arg5[%c0_8, %c0_9] : memref<1x128xi32, #tpu.memory_space<vmem>>, vector<1x128xi32>
    %22 = vector.broadcast %20 : vector<16x1xi32> to vector<16x128xi32>
    %23 = vector.broadcast %21 : vector<1x128xi32> to vector<16x128xi32>
    %24 = arith.cmpi eq, %22, %23 : vector<16x128xi32>
    %25 = arith.andi %24, %19 : vector<16x128xi1>
    %26 = arith.extui %25 : vector<16x128xi1> to vector<16x128xi32>
    %27 = arith.sitofp %26 : vector<16x128xi32> to vector<16x128xf32>
    %c0_10 = arith.constant 0 : index
    %c0_11 = arith.constant 0 : index
    %28 = vector.load %arg7[%c0_10, %c0_11] : memref<16x1xf32, #tpu.memory_space<vmem>>, vector<16x1xf32>
    %cst_12 = arith.constant -1.000000e+30 : f32
    %29 = vector.broadcast %cst_12 : f32 to vector<16x128xf32>
    %30 = arith.select %17, %7, %29 : vector<16x128xi1>, vector<16x128xf32>
    %cst_13 = arith.constant dense<0xFF800000> : vector<16xf32>
    %31 = vector.multi_reduction <maximumf>, %30, %cst_13 [1] : vector<16x128xf32> to vector<16xf32>
    %32 = vector.shape_cast %31 : vector<16xf32> to vector<16x1xf32>
    %33 = arith.maximumf %28, %32 : vector<16x1xf32>
    %34 = arith.subf %28, %33 : vector<16x1xf32>
    %35 = math.exp %34 : vector<16x1xf32>
    %36 = vector.broadcast %33 : vector<16x1xf32> to vector<16x128xf32>
    %37 = arith.subf %7, %36 : vector<16x128xf32>
    %38 = math.exp %37 : vector<16x128xf32>
    %cst_14 = arith.constant 0.000000e+00 : f32
    %39 = vector.broadcast %cst_14 : f32 to vector<16x128xf32>
    %40 = arith.select %19, %38, %39 : vector<16x128xi1>, vector<16x128xf32>
    %c0_15 = arith.constant 0 : index
    %c0_16 = arith.constant 0 : index
    %41 = vector.load %arg8[%c0_15, %c0_16] : memref<16x1xf32, #tpu.memory_space<vmem>>, vector<16x1xf32>
    %42 = arith.mulf %35, %41 : vector<16x1xf32>
    %cst_17 = arith.constant dense<0.000000e+00> : vector<16xf32>
    %43 = vector.multi_reduction <add>, %40, %cst_17 [1] : vector<16x128xf32> to vector<16xf32>
    %44 = vector.shape_cast %43 : vector<16xf32> to vector<16x1xf32>
    %45 = arith.addf %42, %44 : vector<16x1xf32>
    %c0_18 = arith.constant 0 : index
    %c0_19 = arith.constant 0 : index
    %46 = vector.load %arg8[%c0_18, %c0_19] : memref<16x1xf32, #tpu.memory_space<vmem>>, vector<16x1xf32>
    tpu.vector_store %arg8[%c0_18, %c0_19], %45 {strides = array<i32>} : memref<16x1xf32, #tpu.memory_space<vmem>>, vector<16x1xf32>,
    %c0_20 = arith.constant 0 : index
    %c0_21 = arith.constant 0 : index
    %47 = vector.load %arg7[%c0_20, %c0_21] : memref<16x1xf32, #tpu.memory_space<vmem>>, vector<16x1xf32>
    tpu.vector_store %arg7[%c0_20, %c0_21], %33 {strides = array<i32>} : memref<16x1xf32, #tpu.memory_space<vmem>>, vector<16x1xf32>,
    %c0_22 = arith.constant 0 : index
    %c0_23 = arith.constant 0 : index
    %48 = vector.load %arg9[%c0_22, %c0_23] : memref<16x1xf32, #tpu.memory_space<vmem>>, vector<16x1xf32>
    %49 = arith.mulf %27, %7 : vector<16x128xf32>
    %cst_24 = arith.constant dense<0.000000e+00> : vector<16xf32>
    %50 = vector.multi_reduction <add>, %49, %cst_24 [1] : vector<16x128xf32> to vector<16xf32>
    %51 = vector.shape_cast %50 : vector<16xf32> to vector<16x1xf32>
    %52 = arith.addf %48, %51 : vector<16x1xf32>
    %c0_25 = arith.constant 0 : index
    %c0_26 = arith.constant 0 : index
    %53 = vector.load %arg9[%c0_25, %c0_26] : memref<16x1xf32, #tpu.memory_space<vmem>>, vector<16x1xf32>
    tpu.vector_store %arg9[%c0_25, %c0_26], %52 {strides = array<i32>} : memref<16x1xf32, #tpu.memory_space<vmem>>, vector<16x1xf32>,
    %c0_27 = arith.constant 0 : index
    %c0_28 = arith.constant 0 : index
    %54 = vector.load %arg10[%c0_27, %c0_28] : memref<16x1xf32, #tpu.memory_space<vmem>>, vector<16x1xf32>
    %cst_29 = arith.constant dense<0.000000e+00> : vector<16xf32>
    %55 = vector.multi_reduction <add>, %27, %cst_29 [1] : vector<16x128xf32> to vector<16xf32>
    %56 = vector.shape_cast %55 : vector<16xf32> to vector<16x1xf32>
    %57 = arith.addf %54, %56 : vector<16x1xf32>
    %c0_30 = arith.constant 0 : index
    %c0_31 = arith.constant 0 : index
    %58 = vector.load %arg10[%c0_30, %c0_31] : memref<16x1xf32, #tpu.memory_space<vmem>>, vector<16x1xf32>
    tpu.vector_store %arg10[%c0_30, %c0_31], %57 {strides = array<i32>} : memref<16x1xf32, #tpu.memory_space<vmem>>, vector<16x1xf32>,
    %c0_i32_32 = arith.constant 0 : i32
    %59 = arith.cmpi eq, %arg1, %c0_i32_32 : i32
    %60 = arith.extui %59 : i1 to i32
    %c0_i32_33 = arith.constant 0 : i32
    %61 = arith.cmpi ne, %60, %c0_i32_33 : i32
    scf.if %61 {
      %c0_34 = arith.constant 0 : index
      %c0_35 = arith.constant 0 : index
      %62 = vector.load %arg7[%c0_34, %c0_35] : memref<16x1xf32, #tpu.memory_space<vmem>>, vector<16x1xf32>
      %c0_36 = arith.constant 0 : index
      %c0_37 = arith.constant 0 : index
      %63 = vector.load %arg8[%c0_36, %c0_37] : memref<16x1xf32, #tpu.memory_space<vmem>>, vector<16x1xf32>
      %64 = math.log %63 : vector<16x1xf32>
      %65 = arith.addf %62, %64 : vector<16x1xf32>
      %c0_38 = arith.constant 0 : index
      %c0_39 = arith.constant 0 : index
      %66 = vector.load %arg9[%c0_38, %c0_39] : memref<16x1xf32, #tpu.memory_space<vmem>>, vector<16x1xf32>
      %c0_40 = arith.constant 0 : index
      %c0_41 = arith.constant 0 : index
      %67 = vector.load %arg10[%c0_40, %c0_41] : memref<16x1xf32, #tpu.memory_space<vmem>>, vector<16x1xf32>
      %68 = tpu.reciprocal %67 : vector<16x1xf32> -> vector<16x1xf32>
      %69 = arith.mulf %66, %68 : vector<16x1xf32>
      %70 = arith.subf %69, %65 : vector<16x1xf32>
      %cst_42 = arith.constant -1.000000e+00 : f32
      %71 = vector.broadcast %cst_42 : f32 to vector<16x1xf32>
      %72 = arith.mulf %71, %70 : vector<16x1xf32>
      %c0_43 = arith.constant 0 : index
      %c0_44 = arith.constant 0 : index
      %73 = vector.load %arg6[%c0_43, %c0_44] : memref<16x1xf32, #tpu.memory_space<vmem>>, vector<16x1xf32>
      tpu.vector_store %arg6[%c0_43, %c0_44], %72 {strides = array<i32>} : memref<16x1xf32, #tpu.memory_space<vmem>>, vector<16x1xf32>,
    } else {
    }
    return
  }
  func.func @transform_0(%arg0: i32, %arg1: i32) -> (i32, i32) {
    %c0_i32 = arith.constant 0 : i32
    %c0_i32_0 = arith.constant 0 : i32
    return %arg0, %c0_i32 : i32, i32
  }
  func.func @transform_1(%arg0: i32, %arg1: i32) -> (i32, i32) {
    %c0_i32 = arith.constant 0 : i32
    %c0_i32_0 = arith.constant 0 : i32
    return %c0_i32, %arg1 : i32, i32
  }
  func.func @transform_2(%arg0: i32, %arg1: i32) -> (i32, i32) {
    %c0_i32 = arith.constant 0 : i32
    %c0_i32_0 = arith.constant 0 : i32
    return %arg0, %c0_i32 : i32, i32
  }
  func.func @transform_3(%arg0: i32, %arg1: i32) -> (i32, i32) {
    %c0_i32 = arith.constant 0 : i32
    %c0_i32_0 = arith.constant 0 : i32
    return %c0_i32, %arg1 : i32, i32
  }
  func.func @transform_4(%arg0: i32, %arg1: i32) -> (i32, i32) {
    %c0_i32 = arith.constant 0 : i32
    %c0_i32_0 = arith.constant 0 : i32
    return %arg0, %c0_i32 : i32, i32
  }
}

</mosaic_0001>

<llo_original>
// kernel: tpu_custom_call.1
$region0: #{tpu_custom_call.1}
  #allocation0 [shape = 'u32[]', space=smem, size = 0x4, offset = 0x4, fixed_abs, tag = 'smem constant byte address 0x4 - core index']
  #allocation1 [shape = 'u32[144,128]{1,0:T(1,128)}', space=vmem, size = 0x12000, scoped, tag = 'internal scratch']
  #allocation2 [shape = 'f32[16,1]{1,0:T(8,128)}', space=vmem, size = 0x2000, scoped, tag = 'scratch operand']
  #allocation3 [shape = 'f32[16,1]{1,0:T(8,128)}', space=vmem, size = 0x2000, scoped, tag = 'scratch operand']
  #allocation4 [shape = 'f32[16,1]{1,0:T(8,128)}', space=vmem, size = 0x2000, scoped, tag = 'scratch operand']
  #allocation5 [shape = 'f32[16,1]{1,0:T(8,128)}', space=vmem, size = 0x2000, scoped, tag = 'scratch operand']
  %s0 = inlined_call_operand.vmem [shape: f32[16,128], index: 0, kind: input, shape index: {}]
  %s1 = inlined_call_operand.hbm [shape: f32[128,128], index: 1, kind: input, shape index: {}]
  %s2 = inlined_call_operand.vmem [shape: s32[16,1], index: 2, kind: input, shape index: {}]
  %s3 = inlined_call_operand.vmem [shape: s32[1,128], index: 3, kind: input, shape index: {}]
  %s4 = inlined_call_operand.vmem [shape: f32[16,1], index: 4, kind: output, shape index: {}]
  %s5 = sld [smem:[#allocation0]]
  $region38: #{tpu_custom_call.1} parent=0
    _
  %s7 = ssub.s32 1, %s5
  %s8 = scalar_select 0, %s7, %s5
  $region1: #{tpu_custom_call.1} parent=0
    #allocation6 [shape = 'u8[65536]{0}', space=vmem, size = 0x10000, scoped, tag = 'input window, operand 1, single buffered']
    #allocation7 [shape = 's32[1]{0}', space=sflag, size = 0x4, scoped, tag = 'scoped memory for tpu_custom_call.1']
    %9 = vsyncpa [#allocation7], 0
    // Predicated region
    $region2: #{tpu_custom_call.1} parent=1 // pred_check
      _
    $region3: #{tpu_custom_call.1} parent=1 // pred_check_branch
      %11 = sbr.rel (0) target = $region5
    $region4: #{tpu_custom_call.1} parent=1 // pred_region
      _
    $region5: #{tpu_custom_call.1} parent=1 // pred_fallthru
      _
    // Predicated region
    $region6: #{tpu_custom_call.1} parent=1 // pred_check
      _
    $region7: #{tpu_custom_call.1} parent=1 // pred_check_branch
      %13 = sbr.rel (0) target = $region9
    $region8: #{tpu_custom_call.1} parent=1 // pred_region
      %s15 = ssub.s32 2048, 2048
      %16 = vsyncadd [#allocation7], %s15
      %s17 = sshll.u32 [#allocation6], 4
      %s18 = int_to_ptr.vmem [resolvable:$true] %s17
      %23 = dma.hbm_to_vmem [thread:$0]  %s1, 2048, %s18, [#allocation7], 128, 128, 8
    $region9: #{tpu_custom_call.1} parent=1 // pred_fallthru
      _
    // Predicated region
    $region10: #{tpu_custom_call.1} parent=1 // pred_check
      _
    $region11: #{tpu_custom_call.1} parent=1 // pred_check_branch
      %25 = sbr.rel (0) target = $region13
    $region12: #{tpu_custom_call.1} parent=1 // pred_region
      _
    $region13: #{tpu_custom_call.1} parent=1 // pred_fallthru
      _
    // Predicated region
    $region14: #{tpu_custom_call.1} parent=1 // pred_check
      _
    $region15: #{tpu_custom_call.1} parent=1 // pred_check_branch
      %27 = sbr.rel (0) target = $region17
    $region16: #{tpu_custom_call.1} parent=1 // pred_region
      _
    $region17: #{tpu_custom_call.1} parent=1 // pred_fallthru
      _
    // Predicated region
    $region18: #{tpu_custom_call.1} parent=1 // pred_check
      _
    $region19: #{tpu_custom_call.1} parent=1 // pred_check_branch
      %29 = sbr.rel (0) target = $region21
    $region20: #{tpu_custom_call.1} parent=1 // pred_region
      %30 = dma.done [#allocation7], 2048
    $region21: #{tpu_custom_call.1} parent=1 // pred_fallthru
      _
    %p31 = scmp.eq.s32.totalorder 0, 0
    // Predicated region
    $region22: #{tpu_custom_call.1} parent=1 // pred_check
      %p32 = pneg %p31
    $region23: #{tpu_custom_call.1} parent=1 // pred_check_branch
      %34 = sbr.rel (%p32) target = $region25
    $region24: #{tpu_custom_call.1} parent=1 // pred_region
      %vm35 = vcmask 7168
      %36 = vst.msk [vmem:[#allocation2] sm:$0xff] %vm35, -1e+30
      %37 = vst.msk [vmem:[#allocation2 + $0x8] sm:$0xff] %vm35, -1e+30
      %38 = vst.msk [vmem:[#allocation3] sm:$0xff] %vm35, 0.0
      %39 = vst.msk [vmem:[#allocation3 + $0x8] sm:$0xff] %vm35, 0.0
      %40 = vst.msk [vmem:[#allocation4] sm:$0xff] %vm35, 0.0
      %41 = vst.msk [vmem:[#allocation4 + $0x8] sm:$0xff] %vm35, 0.0
      %42 = vst.msk [vmem:[#allocation5] sm:$0xff] %vm35, 0.0
      %43 = vst.msk [vmem:[#allocation5 + $0x8] sm:$0xff] %vm35, 0.0
    $region25: #{tpu_custom_call.1} parent=1 // pred_fallthru
      _
    %v44 = vld [vmem:[%s0] sm:$0xff]
    %v45 = vld [vmem:[%s0 + $0x8] sm:$0xff]
    %v46 = vld [vmem:[#allocation6] sm:$0xff]
    %v47 = vld [vmem:[#allocation6 + $0x8] sm:$0xff]
    %v48 = vld [vmem:[#allocation6 + $0x10] sm:$0xff]
    %v49 = vld [vmem:[#allocation6 + $0x18] sm:$0xff]
    %v50 = vld [vmem:[#allocation6 + $0x20] sm:$0xff]
    %v51 = vld [vmem:[#allocation6 + $0x28] sm:$0xff]
    %v52 = vld [vmem:[#allocation6 + $0x30] sm:$0xff]
    %v53 = vld [vmem:[#allocation6 + $0x38] sm:$0xff]
    %v54 = vld [vmem:[#allocation6 + $0x40] sm:$0xff]
    %v55 = vld [vmem:[#allocation6 + $0x48] sm:$0xff]
    %v56 = vld [vmem:[#allocation6 + $0x50] sm:$0xff]
    %v57 = vld [vmem:[#allocation6 + $0x58] sm:$0xff]
    %v58 = vld [vmem:[#allocation6 + $0x60] sm:$0xff]
    %v59 = vld [vmem:[#allocation6 + $0x68] sm:$0xff]
    %v60 = vld [vmem:[#allocation6 + $0x70] sm:$0xff]
    %v61 = vld [vmem:[#allocation6 + $0x78] sm:$0xff]
    %v62 = vmul.f32 %v44, 14.285714
    %v63 = vmul.f32 %v45, 14.285714
    %64 = vmatprep.subr.mxu0 0.0
    %65 = vmatpush1.msra.mxu0 %v61
    %66 = vmatprep.subr.mxu0 0.0
    %67 = vmatpush1.msra.mxu0 %v60
    %68 = vmatprep.subr.mxu0 0.0
    %69 = vmatpush1.msra.mxu0 %v59
    %70 = vmatprep.subr.mxu0 0.0
    %71 = vmatpush1.msra.mxu0 %v58
    %72 = vmatprep.subr.mxu0 0.0
    %73 = vmatpush1.msra.mxu0 %v57
    %74 = vmatprep.subr.mxu0 0.0
    %75 = vmatpush1.msra.mxu0 %v56
    %76 = vmatprep.subr.mxu0 0.0
    %77 = vmatpush1.msra.mxu0 %v55
    %78 = vmatprep.subr.mxu0 0.0
    %79 = vmatpush1.msra.mxu0 %v54
    %80 = vmatprep.subr.mxu0 0.0
    %81 = vmatpush1.msra.mxu0 %v53
    %82 = vmatprep.subr.mxu0 0.0
    %83 = vmatpush1.msra.mxu0 %v52
    %84 = vmatprep.subr.mxu0 0.0
    %85 = vmatpush1.msra.mxu0 %v51
    %86 = vmatprep.subr.mxu0 0.0
    %87 = vmatpush1.msra.mxu0 %v50
    %88 = vmatprep.subr.mxu0 0.0
    %89 = vmatpush1.msra.mxu0 %v49
    %90 = vmatprep.subr.mxu0 0.0
    %91 = vmatpush1.msra.mxu0 %v48
    %92 = vmatprep.subr.mxu0 0.0
    %93 = vmatpush1.msra.mxu0 %v47
    %94 = vmatprep.subr.mxu0 0.0
    %95 = vmatpush1.msra.mxu0 %v46
    %96 = vmatprep.subr.mxu0 0.0
    %97 = vmatpush2.msra.mxu0 0.0
    %98 = vmatprep.subr.mxu0 0.0
    %99 = vmatpush2.msra.mxu0 0.0
    %100 = vmatprep.subr.mxu0 0.0
    %101 = vmatpush2.msra.mxu0 0.0
    %102 = vmatprep.subr.mxu0 0.0
    %103 = vmatpush2.msra.mxu0 0.0
    %104 = vmatprep.subr.mxu0 0.0
    %105 = vmatpush2.msra.mxu0 0.0
    %106 = vmatprep.subr.mxu0 0.0
    %107 = vmatpush2.msra.mxu0 0.0
    %108 = vmatprep.subr.mxu0 0.0
    %109 = vmatpush2.msra.mxu0 0.0
    %110 = vmatprep.subr.mxu0 0.0
    %111 = vmatpush2.msra.mxu0 0.0
    %112 = vmatprep.subr.mxu0 0.0
    %113 = vmatpush2.msra.mxu0 0.0
    %114 = vmatprep.subr.mxu0 0.0
    %115 = vmatpush2.msra.mxu0 0.0
    %116 = vmatprep.subr.mxu0 0.0
    %117 = vmatpush2.msra.mxu0 0.0
    %118 = vmatprep.subr.mxu0 0.0
    %119 = vmatpush2.msra.mxu0 0.0
    %120 = vmatprep.subr.mxu0 0.0
    %121 = vmatpush2.msra.mxu0 0.0
    %122 = vmatprep.subr.mxu0 0.0
    %123 = vmatpush2.msra.mxu0 0.0
    %124 = vmatprep.subr.mxu0 0.0
    %125 = vmatpush2.msra.mxu0 0.0
    %126 = vmatprep.subr.mxu0 0.0
    %127 = vmatpush2.msra.mxu0 0.0
    %128 = vmatprep.mubr.f32.mxu0 0.0
    %129 = vmatmul.mubr.f32.gmra.mxu0 %v62
    %v130 = vpop.f32.mrf.mxu0
    %v131 = vadd.f32 0.0, %v130
    %v132 = vpop.f32.mrf.mxu0
    %133 = vmatprep.mubr.f32.mxu0 0.0
    %134 = vmatmul.mubr.f32.gmra.mxu0 %v63
    %v135 = vpop.f32.mrf.mxu0
    %v136 = vadd.f32 0.0, %v135
    %v137 = vpop.f32.mrf.mxu0
    %138 = vdwg.mxu0
    %s139 = smul.u32 0, 16
    %v140 = vlaneseq
    %v141 = vshrl.u32 %v140, 7
    %v142 = vadd.s32 %v141, 8
    %v143 = vstv %s139
    %v144 = vadd.s32 %v143, %v141
    %v145 = vadd.s32 %v143, %v142
    %s146 = smul.u32 0, 128
    %v147 = vlaneseq
    %v148 = vand.u32 %v147, 127
    %v149 = vstv %s146
    %v150 = vadd.s32 %v149, %v148
    %vm151 = vcmp.lt.s32.totalorder %v150, 16
    %vm152 = vcmp.ne.s32.totalorder %v144, %v150
    %vm153 = vcmp.ne.s32.totalorder %v145, %v150
    %vm154 = vmand %vm151, %vm152
    %vm155 = vmand %vm151, %vm153
    %v156 = vld [vmem:[%s2] sm:$0xff]
    %v157 = vld [vmem:[%s2 + $0x8] sm:$0xff]
    %v158 = vld [vmem:[%s3] sm:$0x1]
    %159 = vset.pattern.permute.xlu0 0
    %160 = vperm.xlu0 %159, %v156
    %v161 = vpop.permute.xlu0 %160
    %162 = vset.pattern.permute.xlu0 0
    %163 = vperm.xlu0 %162, %v157
    %v164 = vpop.permute.xlu0 %163
    %v165 = vlaneseq
    %v166 = vshrl.u32 %v165, 7
    %v167 = vsub.s32 0, %v166
    %v168 = vrot.slane %v158, %v167
    %vm169 = vcmp.eq.s32.totalorder %v161, %v168
    %vm170 = vcmp.eq.s32.totalorder %v164, %v168
    %vm171 = vmand %vm169, %vm154
    %vm172 = vmand %vm170, %vm155
    %v173 = vsel %vm171, 1, 0
    %v174 = vsel %vm172, 1, 0
    %v175 = vcvt.s32.f32 %v173
    %v176 = vcvt.s32.f32 %v174
    %v177 = vld [vmem:[#allocation2] sm:$0xff]
    %v178 = vld [vmem:[#allocation2 + $0x8] sm:$0xff]
    %v179 = vsel %vm151, %v131, -1e+30
    %v180 = vsel %vm151, %v136, -1e+30
    %181 = vmax.xlane.f32.xlu0 %v179
    %v182 = vpop.xlane.xlu0 %181
    %183 = vmax.xlane.f32.xlu0 %v180
    %v184 = vpop.xlane.xlu0 %183
    %v185 = vmax.f32 %v177, %v182
    %v186 = vmax.f32 %v178, %v184
    %v187 = vsub.f32 %v177, %v185
    %v188 = vsub.f32 %v178, %v186
    %v189 = vmul.f32 %v187, 1.442695
    %v190 = vpow.pop %v189
    %v191 = vmul.f32 %v188, 1.442695
    %v192 = vpow.pop %v191
    %194 = vset.pattern.permute.xlu0 0
    %195 = vperm.xlu0 %194, %v185
    %v196 = vpop.permute.xlu0 %195
    %199 = vset.pattern.permute.xlu0 0
    %200 = vperm.xlu0 %199, %v186
    %v201 = vpop.permute.xlu0 %200
    %v203 = vsub.f32 %v131, %v196
    %v204 = vsub.f32 %v136, %v201
    %v205 = vmul.f32 %v203, 1.442695
    %v206 = vpow.pop %v205
    %v207 = vmul.f32 %v204, 1.442695
    %v208 = vpow.pop %v207
    %v209 = vsel %vm154, %v206, 0.0
    %v210 = vsel %vm155, %v208, 0.0
    %v211 = vld [vmem:[#allocation3] sm:$0xff]
    %v212 = vld [vmem:[#allocation3 + $0x8] sm:$0xff]
    %v213 = vmul.f32 %v190, %v211
    %v214 = vmul.f32 %v192, %v212
    %215 = vadd.xlane.f32.xlu0 %v209
    %v216 = vpop.xlane.xlu0 %215
    %217 = vadd.xlane.f32.xlu0 %v210
    %v218 = vpop.xlane.xlu0 %217
    %v219 = vadd.f32 %v213, %v216
    %v220 = vadd.f32 %v214, %v218
    %vm221 = vcmask 7168
    %222 = vst.msk [vmem:[#allocation3] sm:$0xff] %vm221, %v219
    %223 = vst.msk [vmem:[#allocation3 + $0x8] sm:$0xff] %vm221, %v220
    %224 = vst.msk [vmem:[#allocation2] sm:$0xff] %vm221, %v185
    %225 = vst.msk [vmem:[#allocation2 + $0x8] sm:$0xff] %vm221, %v186
    %v226 = vld [vmem:[#allocation4] sm:$0xff]
    %v227 = vld [vmem:[#allocation4 + $0x8] sm:$0xff]
    %v228 = vmul.f32 %v175, %v131
    %v229 = vmul.f32 %v176, %v136
    %230 = vadd.xlane.f32.xlu0 %v228
    %v231 = vpop.xlane.xlu0 %230
    %232 = vadd.xlane.f32.xlu0 %v229
    %v233 = vpop.xlane.xlu0 %232
    %v234 = vadd.f32 %v226, %v231
    %v235 = vadd.f32 %v227, %v233
    %236 = vst.msk [vmem:[#allocation4] sm:$0xff] %vm221, %v234
    %237 = vst.msk [vmem:[#allocation4 + $0x8] sm:$0xff] %vm221, %v235
    %v238 = vld [vmem:[#allocation5] sm:$0xff]
    %v239 = vld [vmem:[#allocation5 + $0x8] sm:$0xff]
    %240 = vadd.xlane.f32.xlu0 %v175
    %v241 = vpop.xlane.xlu0 %240
    %242 = vadd.xlane.f32.xlu0 %v176
    %v243 = vpop.xlane.xlu0 %242
    %v244 = vadd.f32 %v238, %v241
    %v245 = vadd.f32 %v239, %v243
    %246 = vst.msk [vmem:[#allocation5] sm:$0xff] %vm221, %v244
    %247 = vst.msk [vmem:[#allocation5 + $0x8] sm:$0xff] %vm221, %v245
    // Predicated region
    $region26: #{tpu_custom_call.1} parent=1 // pred_check
      %p248 = pneg %p31
    $region27: #{tpu_custom_call.1} parent=1 // pred_check_branch
      %250 = sbr.rel (%p248) target = $region29
    $region28: #{tpu_custom_call.1} parent=1 // pred_region
      %v251 = vld [vmem:[#allocation2] sm:$0xff]
      %v252 = vld [vmem:[#allocation2 + $0x8] sm:$0xff]
      %v253 = vld [vmem:[#allocation3] sm:$0xff]
      %v254 = vld [vmem:[#allocation3 + $0x8] sm:$0xff]
      %v255 = vlog2.pop %v253
      %v256 = vmul.f32 %v255, 0.6931472
      %v257 = vlog2.pop %v254
      %v258 = vmul.f32 %v257, 0.6931472
      %v259 = vadd.f32 %v251, %v256
      %v260 = vadd.f32 %v252, %v258
      %v261 = vld [vmem:[#allocation4] sm:$0xff]
      %v262 = vld [vmem:[#allocation4 + $0x8] sm:$0xff]
      %v263 = vld [vmem:[#allocation5] sm:$0xff]
      %v264 = vld [vmem:[#allocation5 + $0x8] sm:$0xff]
      %v265 = vrcp.pop %v263
      %v266 = vrcp.pop %v264
      %v267 = vmul.f32 %v261, %v265
      %v268 = vmul.f32 %v262, %v266
      %v269 = vsub.f32 %v267, %v259
      %v270 = vsub.f32 %v268, %v260
      %v271 = vmul.f32 %v269, -1.0
      %v272 = vmul.f32 %v270, -1.0
      %273 = vst.msk [vmem:[%s4] sm:$0xff] %vm221, %v271
      %274 = vst.msk [vmem:[%s4 + $0x8] sm:$0xff] %vm221, %v272
    $region29: #{tpu_custom_call.1} parent=1 // pred_fallthru
      _
    // Predicated region
    $region30: #{tpu_custom_call.1} parent=1 // pred_check
      _
    $region31: #{tpu_custom_call.1} parent=1 // pred_check_branch
      %276 = sbr.rel (0) target = $region33
    $region32: #{tpu_custom_call.1} parent=1 // pred_region
      _
    $region33: #{tpu_custom_call.1} parent=1 // pred_fallthru
      _
    // Predicated region
    $region34: #{tpu_custom_call.1} parent=1 // pred_check
      _
    $region35: #{tpu_custom_call.1} parent=1 // pred_check_branch
      %278 = sbr.rel (0) target = $region37
    $region36: #{tpu_custom_call.1} parent=1 // pred_region
      _
    $region37: #{tpu_custom_call.1} parent=1 // pred_fallthru
      _
    %279 = vsyncpa [#allocation7], 1

</llo_original>
